<compile_context>
chip_gen: v5e
topology: v5e:2x2
jax: 0.10.0
libtpu: 0.0.40
codegen_flags: <defaults>
</compile_context>

<pallas_src>
import functools

import jax
import jax.numpy as jnp
from jax.experimental import pallas as pl
from jax.experimental.pallas import tpu as pltpu


# ---------------------------------------------------------------------------
# Kernel
# ---------------------------------------------------------------------------
def _zrm_kernel(idx_ref, xcT_ref, xrT_ref,          # batch-tiled streams
                cembT_ref, rembT_ref, slab_ref,     # VMEM-resident tables
                out_ref):
    f32 = jnp.float32
    bf16 = jnp.bfloat16
    tb = out_ref.shape[1]                 # batch tile (lanes)
    nf = cembT_ref.shape[0] - 1           # n_factors (last row is the bias)
    fc = xcT_ref.shape[0]                 # nr_coil_features
    fr = xrT_ref.shape[0]                 # nr_recipe_features
    nr_c = cembT_ref.shape[1]
    nr_r = rembT_ref.shape[1]

    # Static, 128-lane-aligned views into the packed MLP weight slab.
    def piece(i, rows, cols):
        c0 = i * 128
        return slab_ref[0:rows, c0:c0 + cols]

    # ---- fused embedding + bias gather via one-hot MXU matmuls (bf16) ------
    ci = idx_ref[0:1, :]                  # (1, TB) int32
    ri = idx_ref[1:2, :]                  # (1, TB) int32
    oh_c = (jax.lax.broadcasted_iota(jnp.int32, (nr_c, tb), 0) == ci).astype(bf16)
    oh_r = (jax.lax.broadcasted_iota(jnp.int32, (nr_r, tb), 0) == ri).astype(bf16)

    ce_aug = jnp.dot(cembT_ref[...], oh_c, preferred_element_type=f32)  # (nf+1, TB)
    re_aug = jnp.dot(rembT_ref[...], oh_r, preferred_element_type=f32)  # (nf+1, TB)
    fmT = (ce_aug[:nf, :] * re_aug[:nf, :]).astype(bf16)                # (nf, TB)
    biasT = ce_aug[nf:, :] + re_aug[nf:, :]                             # (1, TB) f32

    # ---- mlp(features): (Fc+Fr) -> 16 -> 8, ReLU after each layer ----------
    h1 = jnp.maximum(
        jnp.dot(piece(0, 16, fc), xcT_ref[...], preferred_element_type=f32)
        + jnp.dot(piece(1, 16, fr), xrT_ref[...], preferred_element_type=f32)
        + piece(2, 16, 1).astype(f32), 0.0).astype(bf16)                # (16, TB)
    h2 = jnp.maximum(
        jnp.dot(piece(3, 8, 16), h1, preferred_element_type=f32)
        + piece(4, 8, 1).astype(f32), 0.0).astype(bf16)                 # (8, TB)

    # ---- mlp_ensemble(concat([mlp_terms, fm_terms])): (8+nf) -> 8 -> 4 -> 1
    # concat is a split matmul: W3 @ [h2; fm] == W3m @ h2 + W3f @ fm
    h3 = jnp.maximum(
        jnp.dot(piece(5, 8, 8), h2, preferred_element_type=f32)
        + jnp.dot(piece(6, 8, nf), fmT, preferred_element_type=f32)
        + piece(7, 8, 1).astype(f32), 0.0).astype(bf16)                 # (8, TB)
    h4 = jnp.maximum(
        jnp.dot(piece(8, 4, 8), h3, preferred_element_type=f32)
        + piece(9, 4, 1).astype(f32), 0.0).astype(bf16)                 # (4, TB)
    ens = (jnp.dot(piece(10, 1, 4), h4, preferred_element_type=f32)
           + piece(11, 1, 1).astype(f32))                               # (1, TB)

    # ---- predictions = coil_bias + recipe_bias + ensemble (lane-dense) -----
    out_ref[...] = biasT + ens


# ---------------------------------------------------------------------------
# One-time weight preparation (hoisted out of the per-call path)
# ---------------------------------------------------------------------------
def prepare_params(params, nr_coil_features):
    """Transpose, cast to bf16 and pack weights once. Returns a small pytree."""
    bf16 = jnp.bfloat16

    # Embedding tables with the bias folded in as an extra (last) row.
    cembT = jnp.concatenate(
        [params["coil_embeddings"].T, params["coil_bias"].T], axis=0).astype(bf16)
    rembT = jnp.concatenate(
        [params["recipe_embeddings"].T, params["recipe_bias"].T], axis=0).astype(bf16)

    fc = nr_coil_features
    w1T = params["mlp_w1"].T            # (16, fc+fr)
    b1 = params["mlp_b1"].T             # (16, 1)
    w2T = params["mlp_w2"].T            # (8, 16)
    b2 = params["mlp_b2"].T             # (8, 1)
    w3T = params["ens_w1"].T            # (8, 8+nf)
    b3 = params["ens_b1"].T             # (8, 1)
    w4T = params["ens_w2"].T            # (4, 8)
    b4 = params["ens_b2"].T             # (4, 1)
    w5T = params["ens_w3"].T            # (1, 4)
    b5 = params["ens_b3"].T             # (1, 1)

    pieces = [
        w1T[:, :fc],   # 0: (16, fc)
        w1T[:, fc:],   # 1: (16, fr)
        b1,            # 2: (16, 1)
        w2T,           # 3: (8, 16)
        b2,            # 4: (8, 1)
        w3T[:, :8],    # 5: (8, 8)
        w3T[:, 8:],    # 6: (8, nf)
        b3,            # 7: (8, 1)
        w4T,           # 8: (4, 8)
        b4,            # 9: (4, 1)
        w5T,           # 10: (1, 4)
        b5,            # 11: (1, 1)
    ]
    for p in pieces:
        assert p.shape[0] <= 16 and p.shape[1] <= 128, p.shape

    def pad_piece(a):
        a = a.astype(bf16)
        return jnp.pad(a, ((0, 16 - a.shape[0]), (0, 128 - a.shape[1])))

    slab = jnp.concatenate([pad_piece(p) for p in pieces], axis=1)  # (16, 1536)
    return {"cembT": cembT, "rembT": rembT, "slab": slab}


# ---------------------------------------------------------------------------
# Jitted forward
# ---------------------------------------------------------------------------
@functools.partial(jax.jit, static_argnames=("batch_tile",))
def zrm_forward_pallas(coil_indices, recipe_indices, coil_features,
                       recipe_features, prepared, *, batch_tile=2048):
    """ZRM recommender forward pass (eval mode). Returns predictions (B,).

    batch_tile must be a multiple of 128; pick it so the grid has >= 2 steps
    (ideally >= 8 on v7x) for megacore sharding and pipeline overlap.
    """
    B = coil_indices.shape[0]
    fc = coil_features.shape[1]
    fr = recipe_features.shape[1]
    tb = batch_tile
    assert tb % 128 == 0, "batch_tile must be a multiple of 128"

    n_steps = pl.cdiv(B, tb)
    b_pad = n_steps * tb
    pad = b_pad - B

    # ---- batch-varying streams (transposed: batch on lanes) ----------------
    idx = jnp.stack([coil_indices.astype(jnp.int32),
                     recipe_indices.astype(jnp.int32)], axis=0)       # (2, B)
    idx = jnp.pad(idx, ((0, 0), (0, pad)))                            # (2, b_pad)
    xcT = jnp.pad(coil_features.T.astype(jnp.bfloat16), ((0, 0), (0, pad)))
    xrT = jnp.pad(recipe_features.T.astype(jnp.bfloat16), ((0, 0), (0, pad)))

    cembT = prepared["cembT"]            # (nf+1, nr_coils)  bf16
    rembT = prepared["rembT"]            # (nf+1, nr_recipes) bf16
    slab = prepared["slab"]              # (16, 1536)        bf16
    nf = cembT.shape[0] - 1
    nr_c, nr_r = cembT.shape[1], rembT.shape[1]

    batch_inputs = [idx, xcT, xrT]
    weight_inputs = [cembT, rembT, slab]

    batch_specs = [
        pl.BlockSpec((2, tb), lambda i: (0, i)),    # packed indices
        pl.BlockSpec((fc, tb), lambda i: (0, i)),   # coil features^T (bf16)
        pl.BlockSpec((fr, tb), lambda i: (0, i)),   # recipe features^T (bf16)
    ]
    # Constant block index -> weights stay VMEM-resident across grid iterations.
    weight_specs = [pl.BlockSpec(w.shape, lambda i: (0, 0)) for w in weight_inputs]

    # Advisory cost estimate (per padded row x rows).
    gather_flops = 2 * (nf + 1) * (nr_c + nr_r)
    mlp_flops = 2 * (16 * (fc + fr) + 8 * 16 + 8 * 8 + 8 * nf + 4 * 8 + 1 * 4)
    cost = pl.CostEstimate(
        flops=int(b_pad * (gather_flops + mlp_flops)),
        transcendentals=0,
        bytes_accessed=int(b_pad * (2 * 4 + (fc + fr) * 2 + 4)
                           + 2 * (cembT.size + rembT.size + slab.size)),
    )

    out = pl.pallas_call(
        _zrm_kernel,
        out_shape=jax.ShapeDtypeStruct((1, b_pad), jnp.float32),
        grid_spec=pltpu.PrefetchScalarGridSpec(
            num_scalar_prefetch=0,
            grid=(n_steps,),
            in_specs=batch_specs + weight_specs,
            out_specs=pl.BlockSpec((1, tb), lambda i: (0, i)),
        ),
        compiler_params=pltpu.CompilerParams(
            dimension_semantics=("parallel",),       # megacore split on v7x
        ),
        cost_estimate=cost,
    )(*batch_inputs, *weight_inputs)

    return out[0, :B]


# ---------------------------------------------------------------------------
# Synthetic params + pure-JAX reference
# ---------------------------------------------------------------------------
def init_params(key, nr_coils, nr_recipes, nr_coil_features,
                nr_recipe_features, n_factors):
    """Deterministic synthetic parameter init matching the module's shapes."""
    keys = jax.random.split(key, 16)
    f_in = nr_coil_features + nr_recipe_features

    def w(k, shape, scale=0.1):
        return (scale * jax.random.normal(k, shape)).astype(jnp.float32)

    return {
        "coil_embeddings": w(keys[0], (nr_coils, n_factors)),
        "recipe_embeddings": w(keys[1], (nr_recipes, n_factors)),
        "coil_bias": w(keys[2], (nr_coils, 1)),
        "recipe_bias": w(keys[3], (nr_recipes, 1)),
        # mlp: f_in -> 16 -> 8 (no output layer)
        "mlp_w1": w(keys[4], (f_in, 16)),
        "mlp_b1": w(keys[5], (1, 16)),
        "mlp_w2": w(keys[6], (16, 8)),
        "mlp_b2": w(keys[7], (1, 8)),
        # mlp_ensemble: (8 + n_factors) -> 8 -> 4 -> 1 (with output layer)
        "ens_w1": w(keys[8], (8 + n_factors, 8)),
        "ens_b1": w(keys[9], (1, 8)),
        "ens_w2": w(keys[10], (8, 4)),
        "ens_b2": w(keys[11], (1, 4)),
        "ens_w3": w(keys[12], (4, 1)),
        "ens_b3": w(keys[13], (1, 1)),
    }


def zrm_forward_ref(coil_indices, recipe_indices, coil_features,
                    recipe_features, params):
    """Pure-JAX f32 reference (mirrors the PyTorch forward, eval mode)."""
    ce = jnp.take(params["coil_embeddings"], coil_indices, axis=0)
    re = jnp.take(params["recipe_embeddings"], recipe_indices, axis=0)
    cb = jnp.take(params["coil_bias"], coil_indices, axis=0)
    rb = jnp.take(params["recipe_bias"], recipe_indices, axis=0)
    feats = jnp.concatenate([coil_features, recipe_features], axis=1)
    fm = re * ce
    h = jnp.maximum(feats @ params["mlp_w1"] + params["mlp_b1"], 0.0)
    h = jnp.maximum(h @ params["mlp_w2"] + params["mlp_b2"], 0.0)
    z = jnp.concatenate([h, fm], axis=1)
    z = jnp.maximum(z @ params["ens_w1"] + params["ens_b1"], 0.0)
    z = jnp.maximum(z @ params["ens_w2"] + params["ens_b2"], 0.0)
    ens = z @ params["ens_w3"] + params["ens_b3"]
    return cb[:, 0] + rb[:, 0] + ens[:, 0]


if __name__ == "__main__":
    nr_coils, nr_recipes = 20, 30
    nr_coil_features, nr_recipe_features = 6, 5
    n_factors = 10
    batch = 1000        # non-multiple of the tile -> exercises padding path
    batch_tile = 512    # -> b_pad = 1024, 2 grid steps (both TCs busy on v7x)

    key = jax.random.PRNGKey(0)
    k_params, k_ci, k_ri, k_cf, k_rf = jax.random.split(key, 5)

    params = init_params(k_params, nr_coils, nr_recipes,
                         nr_coil_features, nr_recipe_features, n_factors)
    prepared = prepare_params(params, nr_coil_features)   # one-time weight prep

    coil_indices = jax.random.randint(k_ci, (batch,), 0, nr_coils, dtype=jnp.int32)
    recipe_indices = jax.random.randint(k_ri, (batch,), 0, nr_recipes, dtype=jnp.int32)
    coil_features = jax.random.normal(k_cf, (batch, nr_coil_features), dtype=jnp.float32)
    recipe_features = jax.random.normal(k_rf, (batch, nr_recipe_features), dtype=jnp.float32)

    preds = zrm_forward_pallas(coil_indices, recipe_indices,
                               coil_features, recipe_features, prepared,
                               batch_tile=batch_tile)
    preds = jax.block_until_ready(preds)

    ref = zrm_forward_ref(coil_indices, recipe_indices,
                          coil_features, recipe_features, params)
    assert preds.shape == (batch,)
    # bf16 tables/weights/features on the MXU vs f32 reference -> relaxed tol.
    assert jnp.allclose(preds, ref, atol=2e-2, rtol=2e-2), (
        float(jnp.max(jnp.abs(preds - ref))))

    print("KERNEL_OK")
</pallas_src>

<mosaic_0001>
module attributes {stable_mosaic.version = 11 : i64} {
  func.func @_zrm_kernel(%arg0: i32, %arg1: memref<2x512xi32, #tpu.memory_space<vmem>>, %arg2: memref<6x512xbf16, #tpu.memory_space<vmem>>, %arg3: memref<5x512xbf16, #tpu.memory_space<vmem>>, %arg4: memref<11x20xbf16, #tpu.memory_space<vmem>>, %arg5: memref<11x30xbf16, #tpu.memory_space<vmem>>, %arg6: memref<16x1536xbf16, #tpu.memory_space<vmem>>, %arg7: memref<1x512xf32, #tpu.memory_space<vmem>>) attributes {dimension_semantics = [#tpu.dimension_semantics<parallel>], iteration_bounds = array<i64: 2>, scalar_prefetch = 0 : i64, scratch_operands = 0 : i64, tpu.core_type = #tpu.core_type<tc>, window_params = [{transform_indices = @transform_0, window_bounds = array<i64: 2, 512>}, {transform_indices = @transform_1, window_bounds = array<i64: 6, 512>}, {transform_indices = @transform_2, window_bounds = array<i64: 5, 512>}, {pipeline_mode = #tpu.pipeline_mode<synchronous>, transform_indices = @transform_3, window_bounds = array<i64: 11, 20>}, {pipeline_mode = #tpu.pipeline_mode<synchronous>, transform_indices = @transform_4, window_bounds = array<i64: 11, 30>}, {pipeline_mode = #tpu.pipeline_mode<synchronous>, transform_indices = @transform_5, window_bounds = array<i64: 16, 1536>}, {transform_indices = @transform_6, window_bounds = array<i64: 1, 512>}]} {
    %c0 = arith.constant 0 : index
    %c0_0 = arith.constant 0 : index
    %0 = vector.load %arg1[%c0, %c0_0] : memref<2x512xi32, #tpu.memory_space<vmem>>, vector<1x512xi32>
    %c1 = arith.constant 1 : index
    %c0_1 = arith.constant 0 : index
    %1 = vector.load %arg1[%c1, %c0_1] : memref<2x512xi32, #tpu.memory_space<vmem>>, vector<1x512xi32>
    %2 = tpu.iota {dimensions = array<i32: 0>} : vector<20x512xi32>
    %3 = vector.broadcast %0 : vector<1x512xi32> to vector<20x512xi32>
    %4 = arith.cmpi eq, %2, %3 : vector<20x512xi32>
    %5 = arith.extui %4 : vector<20x512xi1> to vector<20x512xi32>
    %6 = arith.sitofp %5 : vector<20x512xi32> to vector<20x512xf32>
    %7 = arith.truncf %6 : vector<20x512xf32> to vector<20x512xbf16>
    %8 = tpu.iota {dimensions = array<i32: 0>} : vector<30x512xi32>
    %9 = vector.broadcast %1 : vector<1x512xi32> to vector<30x512xi32>
    %10 = arith.cmpi eq, %8, %9 : vector<30x512xi32>
    %11 = arith.extui %10 : vector<30x512xi1> to vector<30x512xi32>
    %12 = arith.sitofp %11 : vector<30x512xi32> to vector<30x512xf32>
    %13 = arith.truncf %12 : vector<30x512xf32> to vector<30x512xbf16>
    %c0_2 = arith.constant 0 : index
    %c0_3 = arith.constant 0 : index
    %14 = vector.load %arg4[%c0_2, %c0_3] : memref<11x20xbf16, #tpu.memory_space<vmem>>, vector<11x20xbf16>
    %cst = arith.constant dense<0.000000e+00> : vector<11x512xf32>
    %15 = tpu.matmul %14, %7, %cst {dimension_numbers = #tpu.dot_dimension_numbers<[1], [0], [0], [1], [0, 0, 1, 1], [], []>} : vector<11x20xbf16>, vector<20x512xbf16>, vector<11x512xf32> -> vector<11x512xf32>
    %c0_4 = arith.constant 0 : index
    %c0_5 = arith.constant 0 : index
    %16 = vector.load %arg5[%c0_4, %c0_5] : memref<11x30xbf16, #tpu.memory_space<vmem>>, vector<11x30xbf16>
    %cst_6 = arith.constant dense<0.000000e+00> : vector<11x512xf32>
    %17 = tpu.matmul %16, %13, %cst_6 {dimension_numbers = #tpu.dot_dimension_numbers<[1], [0], [0], [1], [0, 0, 1, 1], [], []>} : vector<11x30xbf16>, vector<30x512xbf16>, vector<11x512xf32> -> vector<11x512xf32>
    %18 = vector.extract_strided_slice %15 {offsets = [0, 0], sizes = [10, 512], strides = [1, 1]} : vector<11x512xf32> to vector<10x512xf32>
    %19 = vector.extract_strided_slice %17 {offsets = [0, 0], sizes = [10, 512], strides = [1, 1]} : vector<11x512xf32> to vector<10x512xf32>
    %20 = arith.mulf %18, %19 : vector<10x512xf32>
    %21 = arith.truncf %20 : vector<10x512xf32> to vector<10x512xbf16>
    %22 = vector.extract_strided_slice %15 {offsets = [10, 0], sizes = [1, 512], strides = [1, 1]} : vector<11x512xf32> to vector<1x512xf32>
    %23 = vector.extract_strided_slice %17 {offsets = [10, 0], sizes = [1, 512], strides = [1, 1]} : vector<11x512xf32> to vector<1x512xf32>
    %24 = arith.addf %22, %23 : vector<1x512xf32>
    %c0_7 = arith.constant 0 : index
    %c0_8 = arith.constant 0 : index
    %25 = vector.load %arg6[%c0_7, %c0_8] : memref<16x1536xbf16, #tpu.memory_space<vmem>>, vector<16x6xbf16>
    %c0_9 = arith.constant 0 : index
    %c0_10 = arith.constant 0 : index
    %26 = vector.load %arg2[%c0_9, %c0_10] : memref<6x512xbf16, #tpu.memory_space<vmem>>, vector<6x512xbf16>
    %cst_11 = arith.constant dense<0.000000e+00> : vector<16x512xf32>
    %27 = tpu.matmul %25, %26, %cst_11 {dimension_numbers = #tpu.dot_dimension_numbers<[1], [0], [0], [1], [0, 0, 1, 1], [], []>} : vector<16x6xbf16>, vector<6x512xbf16>, vector<16x512xf32> -> vector<16x512xf32>
    %c0_12 = arith.constant 0 : index
    %c128 = arith.constant 128 : index
    %28 = vector.load %arg6[%c0_12, %c128] : memref<16x1536xbf16, #tpu.memory_space<vmem>>, vector<16x5xbf16>
    %c0_13 = arith.constant 0 : index
    %c0_14 = arith.constant 0 : index
    %29 = vector.load %arg3[%c0_13, %c0_14] : memref<5x512xbf16, #tpu.memory_space<vmem>>, vector<5x512xbf16>
    %cst_15 = arith.constant dense<0.000000e+00> : vector<16x512xf32>
    %30 = tpu.matmul %28, %29, %cst_15 {dimension_numbers = #tpu.dot_dimension_numbers<[1], [0], [0], [1], [0, 0, 1, 1], [], []>} : vector<16x5xbf16>, vector<5x512xbf16>, vector<16x512xf32> -> vector<16x512xf32>
    %31 = arith.addf %27, %30 : vector<16x512xf32>
    %c0_16 = arith.constant 0 : index
    %c256 = arith.constant 256 : index
    %32 = vector.load %arg6[%c0_16, %c256] : memref<16x1536xbf16, #tpu.memory_space<vmem>>, vector<16x1xbf16>
    %33 = arith.extf %32 : vector<16x1xbf16> to vector<16x1xf32>
    %34 = vector.broadcast %33 : vector<16x1xf32> to vector<16x512xf32>
    %35 = arith.addf %31, %34 : vector<16x512xf32>
    %cst_17 = arith.constant 0.000000e+00 : f32
    %36 = vector.broadcast %cst_17 : f32 to vector<16x512xf32>
    %37 = arith.maximumf %35, %36 : vector<16x512xf32>
    %38 = arith.truncf %37 : vector<16x512xf32> to vector<16x512xbf16>
    %c0_18 = arith.constant 0 : index
    %c384 = arith.constant 384 : index
    %39 = vector.load %arg6[%c0_18, %c384] : memref<16x1536xbf16, #tpu.memory_space<vmem>>, vector<8x16xbf16>
    %cst_19 = arith.constant dense<0.000000e+00> : vector<8x512xf32>
    %40 = tpu.matmul %39, %38, %cst_19 {dimension_numbers = #tpu.dot_dimension_numbers<[1], [0], [0], [1], [0, 0, 1, 1], [], []>} : vector<8x16xbf16>, vector<16x512xbf16>, vector<8x512xf32> -> vector<8x512xf32>
    %c0_20 = arith.constant 0 : index
    %c512 = arith.constant 512 : index
    %41 = vector.load %arg6[%c0_20, %c512] : memref<16x1536xbf16, #tpu.memory_space<vmem>>, vector<8x1xbf16>
    %42 = arith.extf %41 : vector<8x1xbf16> to vector<8x1xf32>
    %43 = vector.broadcast %42 : vector<8x1xf32> to vector<8x512xf32>
    %44 = arith.addf %40, %43 : vector<8x512xf32>
    %cst_21 = arith.constant 0.000000e+00 : f32
    %45 = vector.broadcast %cst_21 : f32 to vector<8x512xf32>
    %46 = arith.maximumf %44, %45 : vector<8x512xf32>
    %47 = arith.truncf %46 : vector<8x512xf32> to vector<8x512xbf16>
    %c0_22 = arith.constant 0 : index
    %c640 = arith.constant 640 : index
    %48 = vector.load %arg6[%c0_22, %c640] : memref<16x1536xbf16, #tpu.memory_space<vmem>>, vector<8x8xbf16>
    %cst_23 = arith.constant dense<0.000000e+00> : vector<8x512xf32>
    %49 = tpu.matmul %48, %47, %cst_23 {dimension_numbers = #tpu.dot_dimension_numbers<[1], [0], [0], [1], [0, 0, 1, 1], [], []>} : vector<8x8xbf16>, vector<8x512xbf16>, vector<8x512xf32> -> vector<8x512xf32>
    %c0_24 = arith.constant 0 : index
    %c768 = arith.constant 768 : index
    %50 = vector.load %arg6[%c0_24, %c768] : memref<16x1536xbf16, #tpu.memory_space<vmem>>, vector<8x10xbf16>
    %cst_25 = arith.constant dense<0.000000e+00> : vector<8x512xf32>
    %51 = tpu.matmul %50, %21, %cst_25 {dimension_numbers = #tpu.dot_dimension_numbers<[1], [0], [0], [1], [0, 0, 1, 1], [], []>} : vector<8x10xbf16>, vector<10x512xbf16>, vector<8x512xf32> -> vector<8x512xf32>
    %52 = arith.addf %49, %51 : vector<8x512xf32>
    %c0_26 = arith.constant 0 : index
    %c896 = arith.constant 896 : index
    %53 = vector.load %arg6[%c0_26, %c896] : memref<16x1536xbf16, #tpu.memory_space<vmem>>, vector<8x1xbf16>
    %54 = arith.extf %53 : vector<8x1xbf16> to vector<8x1xf32>
    %55 = vector.broadcast %54 : vector<8x1xf32> to vector<8x512xf32>
    %56 = arith.addf %52, %55 : vector<8x512xf32>
    %cst_27 = arith.constant 0.000000e+00 : f32
    %57 = vector.broadcast %cst_27 : f32 to vector<8x512xf32>
    %58 = arith.maximumf %56, %57 : vector<8x512xf32>
    %59 = arith.truncf %58 : vector<8x512xf32> to vector<8x512xbf16>
    %c0_28 = arith.constant 0 : index
    %c1024 = arith.constant 1024 : index
    %60 = vector.load %arg6[%c0_28, %c1024] : memref<16x1536xbf16, #tpu.memory_space<vmem>>, vector<4x8xbf16>
    %cst_29 = arith.constant dense<0.000000e+00> : vector<4x512xf32>
    %61 = tpu.matmul %60, %59, %cst_29 {dimension_numbers = #tpu.dot_dimension_numbers<[1], [0], [0], [1], [0, 0, 1, 1], [], []>} : vector<4x8xbf16>, vector<8x512xbf16>, vector<4x512xf32> -> vector<4x512xf32>
    %c0_30 = arith.constant 0 : index
    %c1152 = arith.constant 1152 : index
    %62 = vector.load %arg6[%c0_30, %c1152] : memref<16x1536xbf16, #tpu.memory_space<vmem>>, vector<4x1xbf16>
    %63 = arith.extf %62 : vector<4x1xbf16> to vector<4x1xf32>
    %64 = vector.broadcast %63 : vector<4x1xf32> to vector<4x512xf32>
    %65 = arith.addf %61, %64 : vector<4x512xf32>
    %cst_31 = arith.constant 0.000000e+00 : f32
    %66 = vector.broadcast %cst_31 : f32 to vector<4x512xf32>
    %67 = arith.maximumf %65, %66 : vector<4x512xf32>
    %68 = arith.truncf %67 : vector<4x512xf32> to vector<4x512xbf16>
    %c0_32 = arith.constant 0 : index
    %c1280 = arith.constant 1280 : index
    %69 = vector.load %arg6[%c0_32, %c1280] : memref<16x1536xbf16, #tpu.memory_space<vmem>>, vector<1x4xbf16>
    %cst_33 = arith.constant dense<0.000000e+00> : vector<1x512xf32>
    %70 = tpu.matmul %69, %68, %cst_33 {dimension_numbers = #tpu.dot_dimension_numbers<[1], [0], [0], [1], [0, 0, 1, 1], [], []>} : vector<1x4xbf16>, vector<4x512xbf16>, vector<1x512xf32> -> vector<1x512xf32>
    %c0_34 = arith.constant 0 : index
    %c1408 = arith.constant 1408 : index
    %71 = vector.load %arg6[%c0_34, %c1408] : memref<16x1536xbf16, #tpu.memory_space<vmem>>, vector<1x1xbf16>
    %72 = arith.extf %71 : vector<1x1xbf16> to vector<1x1xf32>
    %73 = vector.broadcast %72 : vector<1x1xf32> to vector<1x512xf32>
    %74 = arith.addf %70, %73 : vector<1x512xf32>
    %75 = arith.addf %24, %74 : vector<1x512xf32>
    %c0_35 = arith.constant 0 : index
    %c0_36 = arith.constant 0 : index
    %76 = vector.load %arg7[%c0_35, %c0_36] : memref<1x512xf32, #tpu.memory_space<vmem>>, vector<1x512xf32>
    tpu.vector_store %arg7[%c0_35, %c0_36], %75 {strides = array<i32>} : memref<1x512xf32, #tpu.memory_space<vmem>>, vector<1x512xf32>,
    return
  }
  func.func @transform_0(%arg0: i32) -> (i32, i32) {
    %c0_i32 = arith.constant 0 : i32
    %c0_i32_0 = arith.constant 0 : i32
    return %c0_i32, %arg0 : i32, i32
  }
  func.func @transform_1(%arg0: i32) -> (i32, i32) {
    %c0_i32 = arith.constant 0 : i32
    %c0_i32_0 = arith.constant 0 : i32
    return %c0_i32, %arg0 : i32, i32
  }
  func.func @transform_2(%arg0: i32) -> (i32, i32) {
    %c0_i32 = arith.constant 0 : i32
    %c0_i32_0 = arith.constant 0 : i32
    return %c0_i32, %arg0 : i32, i32
  }
  func.func @transform_3(%arg0: i32) -> (i32, i32) {
    %c0_i32 = arith.constant 0 : i32
    %c0_i32_0 = arith.constant 0 : i32
    %c0_i32_1 = arith.constant 0 : i32
    return %c0_i32, %c0_i32_0 : i32, i32
  }
  func.func @transform_4(%arg0: i32) -> (i32, i32) {
    %c0_i32 = arith.constant 0 : i32
    %c0_i32_0 = arith.constant 0 : i32
    %c0_i32_1 = arith.constant 0 : i32
    return %c0_i32, %c0_i32_0 : i32, i32
  }
  func.func @transform_5(%arg0: i32) -> (i32, i32) {
    %c0_i32 = arith.constant 0 : i32
    %c0_i32_0 = arith.constant 0 : i32
    %c0_i32_1 = arith.constant 0 : i32
    return %c0_i32, %c0_i32_0 : i32, i32
  }
  func.func @transform_6(%arg0: i32) -> (i32, i32) {
    %c0_i32 = arith.constant 0 : i32
    %c0_i32_0 = arith.constant 0 : i32
    return %c0_i32, %arg0 : i32, i32
  }
}

</mosaic_0001>

<llo_original>
// kernel: zrm_forward_pallas.1
$region0: #{zrm_forward_pallas.1}
  #allocation0 [shape = 'u32[]', space=smem, size = 0x4, offset = 0x4, fixed_abs, tag = 'smem constant byte address 0x4 - core index']
  #allocation1 [shape = 'u32[72,128]{1,0:T(1,128)}', space=vmem, size = 0x9000, scoped, tag = 'internal scratch']
  %s0 = inlined_call_operand.vmem [shape: s32[2,1024], index: 0, kind: input, shape index: {}]
  %s1 = inlined_call_operand.vmem [shape: bf16[6,1024], index: 1, kind: input, shape index: {}]
  %s2 = inlined_call_operand.vmem [shape: bf16[5,1024], index: 2, kind: input, shape index: {}]
  %s3 = inlined_call_operand.vmem [shape: bf16[11,20], index: 3, kind: input, shape index: {}]
  %s4 = inlined_call_operand.vmem [shape: bf16[11,30], index: 4, kind: input, shape index: {}]
  %s5 = inlined_call_operand.vmem [shape: bf16[16,1536], index: 5, kind: input, shape index: {}]
  %s6 = inlined_call_operand.hbm [shape: f32[1,1024], index: 6, kind: output, shape index: {}]
  %s7 = sld [smem:[#allocation0]]
  $region57: #{zrm_forward_pallas.1} parent=0
    _
  %s9 = ssub.s32 1, %s7
  %s10 = scalar_select 0, %s9, %s7
  $region1: #{zrm_forward_pallas.1} parent=0
    #allocation2 [shape = 'u8[4096]{0}', space=vmem, size = 0x1000, scoped, tag = 'output window, operand 0']
    #allocation3 [shape = 's32[2]{0}', space=sflag, size = 0x8, scoped, tag = 'scoped memory for zrm_forward_pallas.1']
    %11 = vsyncpa [#allocation3], 0
    %s12 = scalar_lea.sflag [#allocation3], 1
    %13 = vsyncpa %s12, 0
    loop: start=0, step=1, limit=4
    $region2: #{zrm_forward_pallas.1} parent=1 // loop_pre_header
      _
    $region3: #{zrm_forward_pallas.1} parent=1 // loop_header
      %s15 = sphi 0, %s19
      %p16 = scmp.ge.s32.totalorder %s15, 4
      %s25 = sphi 0, %s27
      %s28 = sphi 0, %s25
      %s29 = sphi 0, %s28
      %s45 = sphi 0, %s29
      %s51 = sphi 0, %s53
      %s54 = sphi 0, %s51
      %s55 = sphi 0, %s54
      %s71 = sphi 0, %s55
      %s77 = sphi 0, %s79
      %s80 = sphi 0, %s77
      %s81 = sphi 0, %s80
      %s97 = sphi 0, %s81
      %s101 = sphi 0, %s101
      %s103 = sphi 0, %s101
      %s104 = sphi 0, %s103
      %s118 = sphi 0, %s104
      %s122 = sphi 0, %s122
      %s124 = sphi 0, %s122
      %s125 = sphi 0, %s124
      %s139 = sphi 0, %s125
      %s143 = sphi 0, %s143
      %s145 = sphi 0, %s143
      %s146 = sphi 0, %s145
      %s160 = sphi 0, %s146
      %s166 = sphi 0, %s168
      %s169 = sphi 0, %s166
      %s170 = sphi 0, %s169
      %s186 = sphi 0, %s170
    $region4: #{zrm_forward_pallas.1} parent=1 // loop_header_branch
      %18 = sbr.rel (%p16) target = $region8
    $region5: #{zrm_forward_pallas.1} parent=1 // loop_body
      %s20 = ssub.s32 %s15, 1
      %s21 = ssub.s32 %s15, 2
      %s22 = sadd.s32 %s15, 1
      %s23 = ssub.s32 %s15, %s22
      %p24 = scmp.eq.s32.totalorder %s23, 0
      %s26 = sadd.s32 %s25, 1
      %s27 = scalar_select %p24, %s25, %s26
      %p30 = pneg %p24
      %p31 = scmp.eq.s32.totalorder %s15, 1
      %p32 = por %p30, %p31
      %p33 = scmp.ne.s32.totalorder %s25, %s28
      %p34 = scmp.eq.s32.totalorder %s15, 0
      %p35 = por %p33, %p34
      %p36 = scmp.ne.s32.totalorder %s25, %s28
      %p37 = scmp.eq.s32.totalorder %s20, 1
      %p38 = por %p36, %p37
      %p39 = scmp.ne.s32.totalorder %s28, %s29
      %p40 = scmp.eq.s32.totalorder %s20, 0
      %p41 = por %p39, %p40
      %p42 = scmp.ne.s32.totalorder %s28, %s29
      %p43 = scmp.eq.s32.totalorder %s21, 1
      %p44 = por %p42, %p43
      %p46 = scmp.ne.s32.totalorder %s29, %s45
      %p47 = scmp.eq.s32.totalorder %s21, 0
      %p48 = por %p46, %p47
      %s49 = ssub.s32 %s15, %s22
      %p50 = scmp.eq.s32.totalorder %s49, 0
      %s52 = sadd.s32 %s51, 1
      %s53 = scalar_select %p50, %s51, %s52
      %p56 = pneg %p50
      %p57 = scmp.eq.s32.totalorder %s15, 1
      %p58 = por %p56, %p57
      %p59 = scmp.ne.s32.totalorder %s51, %s54
      %p60 = scmp.eq.s32.totalorder %s15, 0
      %p61 = por %p59, %p60
      %p62 = scmp.ne.s32.totalorder %s51, %s54
      %p63 = scmp.eq.s32.totalorder %s20, 1
      %p64 = por %p62, %p63
      %p65 = scmp.ne.s32.totalorder %s54, %s55
      %p66 = scmp.eq.s32.totalorder %s20, 0
      %p67 = por %p65, %p66
      %p68 = scmp.ne.s32.totalorder %s54, %s55
      %p69 = scmp.eq.s32.totalorder %s21, 1
      %p70 = por %p68, %p69
      %p72 = scmp.ne.s32.totalorder %s55, %s71
      %p73 = scmp.eq.s32.totalorder %s21, 0
      %p74 = por %p72, %p73
      %s75 = ssub.s32 %s15, %s22
      %p76 = scmp.eq.s32.totalorder %s75, 0
      %s78 = sadd.s32 %s77, 1
      %s79 = scalar_select %p76, %s77, %s78
      %p82 = pneg %p76
      %p83 = scmp.eq.s32.totalorder %s15, 1
      %p84 = por %p82, %p83
      %p85 = scmp.ne.s32.totalorder %s77, %s80
      %p86 = scmp.eq.s32.totalorder %s15, 0
      %p87 = por %p85, %p86
      %p88 = scmp.ne.s32.totalorder %s77, %s80
      %p89 = scmp.eq.s32.totalorder %s20, 1
      %p90 = por %p88, %p89
      %p91 = scmp.ne.s32.totalorder %s80, %s81
      %p92 = scmp.eq.s32.totalorder %s20, 0
      %p93 = por %p91, %p92
      %p94 = scmp.ne.s32.totalorder %s80, %s81
      %p95 = scmp.eq.s32.totalorder %s21, 1
      %p96 = por %p94, %p95
      %p98 = scmp.ne.s32.totalorder %s81, %s97
      %p99 = scmp.eq.s32.totalorder %s21, 0
      %p100 = por %p98, %p99
      %s102 = sadd.s32 %s101, 1
      %p105 = scmp.eq.s32.totalorder %s15, 1
      %p106 = scmp.ne.s32.totalorder %s101, %s103
      %p107 = scmp.eq.s32.totalorder %s15, 0
      %p108 = por %p106, %p107
      %p109 = scmp.ne.s32.totalorder %s101, %s103
      %p110 = scmp.eq.s32.totalorder %s20, 1
      %p111 = por %p109, %p110
      %p112 = scmp.ne.s32.totalorder %s103, %s104
      %p113 = scmp.eq.s32.totalorder %s20, 0
      %p114 = por %p112, %p113
      %p115 = scmp.ne.s32.totalorder %s103, %s104
      %p116 = scmp.eq.s32.totalorder %s21, 1
      %p117 = por %p115, %p116
      %p119 = scmp.ne.s32.totalorder %s104, %s118
      %p120 = scmp.eq.s32.totalorder %s21, 0
      %p121 = por %p119, %p120
      %s123 = sadd.s32 %s122, 1
      %p126 = scmp.eq.s32.totalorder %s15, 1
      %p127 = scmp.ne.s32.totalorder %s122, %s124
      %p128 = scmp.eq.s32.totalorder %s15, 0
      %p129 = por %p127, %p128
      %p130 = scmp.ne.s32.totalorder %s122, %s124
      %p131 = scmp.eq.s32.totalorder %s20, 1
      %p132 = por %p130, %p131
      %p133 = scmp.ne.s32.totalorder %s124, %s125
      %p134 = scmp.eq.s32.totalorder %s20, 0
      %p135 = por %p133, %p134
      %p136 = scmp.ne.s32.totalorder %s124, %s125
      %p137 = scmp.eq.s32.totalorder %s21, 1
      %p138 = por %p136, %p137
      %p140 = scmp.ne.s32.totalorder %s125, %s139
      %p141 = scmp.eq.s32.totalorder %s21, 0
      %p142 = por %p140, %p141
      %s144 = sadd.s32 %s143, 1
      %p147 = scmp.eq.s32.totalorder %s15, 1
      %p148 = scmp.ne.s32.totalorder %s143, %s145
      %p149 = scmp.eq.s32.totalorder %s15, 0
      %p150 = por %p148, %p149
      %p151 = scmp.ne.s32.totalorder %s143, %s145
      %p152 = scmp.eq.s32.totalorder %s20, 1
      %p153 = por %p151, %p152
      %p154 = scmp.ne.s32.totalorder %s145, %s146
      %p155 = scmp.eq.s32.totalorder %s20, 0
      %p156 = por %p154, %p155
      %p157 = scmp.ne.s32.totalorder %s145, %s146
      %p158 = scmp.eq.s32.totalorder %s21, 1
      %p159 = por %p157, %p158
      %p161 = scmp.ne.s32.totalorder %s146, %s160
      %p162 = scmp.eq.s32.totalorder %s21, 0
      %p163 = por %p161, %p162
      %s164 = ssub.s32 %s15, %s22
      %p165 = scmp.eq.s32.totalorder %s164, 0
      %s167 = sadd.s32 %s166, 1
      %s168 = scalar_select %p165, %s166, %s167
      %p171 = pneg %p165
      %p172 = scmp.eq.s32.totalorder %s15, 1
      %p173 = por %p171, %p172
      %p174 = scmp.ne.s32.totalorder %s166, %s169
      %p175 = scmp.eq.s32.totalorder %s15, 0
      %p176 = por %p174, %p175
      %p177 = scmp.ne.s32.totalorder %s166, %s169
      %p178 = scmp.eq.s32.totalorder %s20, 1
      %p179 = por %p177, %p178
      %p180 = scmp.ne.s32.totalorder %s169, %s170
      %p181 = scmp.eq.s32.totalorder %s20, 0
      %p182 = por %p180, %p181
      %p183 = scmp.ne.s32.totalorder %s169, %s170
      %p184 = scmp.eq.s32.totalorder %s21, 1
      %p185 = por %p183, %p184
      %p187 = scmp.ne.s32.totalorder %s170, %s186
      %p188 = scmp.eq.s32.totalorder %s21, 0
      %p189 = por %p187, %p188
      %p190 = scmp.le.s32.totalorder 1, %s15
      %p191 = scmp.lt.s32.totalorder %s15, 3
      %p192 = pnand %p190, %p191
      %p193 = pneg %p192
      // Predicated region
      $region9: #{zrm_forward_pallas.1} parent=5 // pred_check
        _
      $region10: #{zrm_forward_pallas.1} parent=5 // pred_check_branch
        %195 = sbr.rel (%p192) target = $region12
      $region11: #{zrm_forward_pallas.1} parent=5 // pred_region
        %s196 = ssub.s32 %s15, 1
        // Predicated region
        $region13: #{zrm_forward_pallas.1} parent=11 // pred_check
          %p197 = pneg %p114
        $region14: #{zrm_forward_pallas.1} parent=11 // pred_check_branch
          %199 = sbr.rel (%p197) target = $region16
        $region15: #{zrm_forward_pallas.1} parent=11 // pred_region
          _
        $region16: #{zrm_forward_pallas.1} parent=11 // pred_fallthru
          _
        // Predicated region
        $region17: #{zrm_forward_pallas.1} parent=11 // pred_check
          %p200 = pneg %p135
        $region18: #{zrm_forward_pallas.1} parent=11 // pred_check_branch
          %202 = sbr.rel (%p200) target = $region20
        $region19: #{zrm_forward_pallas.1} parent=11 // pred_region
          _
        $region20: #{zrm_forward_pallas.1} parent=11 // pred_fallthru
          _
        // Predicated region
        $region21: #{zrm_forward_pallas.1} parent=11 // pred_check
          %p203 = pneg %p156
        $region22: #{zrm_forward_pallas.1} parent=11 // pred_check_branch
          %205 = sbr.rel (%p203) target = $region24
        $region23: #{zrm_forward_pallas.1} parent=11 // pred_region
          _
        $region24: #{zrm_forward_pallas.1} parent=11 // pred_fallthru
          _
      $region12: #{zrm_forward_pallas.1} parent=5 // pred_fallthru
        _
      %p206 = scmp.lt.s32.totalorder %s15, 2
      // Predicated region
      $region25: #{zrm_forward_pallas.1} parent=5 // pred_check
        %p207 = pneg %p206
      $region26: #{zrm_forward_pallas.1} parent=5 // pred_check_branch
        %209 = sbr.rel (%p207) target = $region28
      $region27: #{zrm_forward_pallas.1} parent=5 // pred_region
        // Predicated region
        $region29: #{zrm_forward_pallas.1} parent=27 // pred_check
          %p210 = pneg %p35
        $region30: #{zrm_forward_pallas.1} parent=27 // pred_check_branch
          %212 = sbr.rel (%p210) target = $region32
        $region31: #{zrm_forward_pallas.1} parent=27 // pred_region
          %s213 = smul.u32 4, %s15
          %p214 = scmp.lt.s32.totalorder %s213, 7
          %s215 = scalar_select %p214, %s213, 7
          %s216 = smul.addr %s215, 2
          %s217 = scalar_lea.vmem %s0, %s216
          %s218 = smul.u32 4, %s15
        $region32: #{zrm_forward_pallas.1} parent=27 // pred_fallthru
          _
        // Predicated region
        $region33: #{zrm_forward_pallas.1} parent=27 // pred_check
          %p219 = pneg %p61
        $region34: #{zrm_forward_pallas.1} parent=27 // pred_check_branch
          %221 = sbr.rel (%p219) target = $region36
        $region35: #{zrm_forward_pallas.1} parent=27 // pred_region
          %s222 = smul.u32 4, %s15
          %p223 = scmp.lt.s32.totalorder %s222, 7
          %s224 = scalar_select %p223, %s222, 7
          %s225 = smul.addr %s224, 4
          %s226 = scalar_lea.vmem %s1, %s225
          %s227 = smul.u32 4, %s15
        $region36: #{zrm_forward_pallas.1} parent=27 // pred_fallthru
          _
        // Predicated region
        $region37: #{zrm_forward_pallas.1} parent=27 // pred_check
          %p228 = pneg %p87
        $region38: #{zrm_forward_pallas.1} parent=27 // pred_check_branch
          %230 = sbr.rel (%p228) target = $region40
        $region39: #{zrm_forward_pallas.1} parent=27 // pred_region
          %s231 = smul.u32 4, %s15
          %p232 = scmp.lt.s32.totalorder %s231, 7
          %s233 = scalar_select %p232, %s231, 7
          %s234 = smul.addr %s233, 4
          %s235 = scalar_lea.vmem %s2, %s234
          %s236 = smul.u32 4, %s15
        $region40: #{zrm_forward_pallas.1} parent=27 // pred_fallthru
          _
      $region28: #{zrm_forward_pallas.1} parent=5 // pred_fallthru
        _
      %p237 = scmp.le.s32.totalorder 1, %s15
      %p238 = scmp.lt.s32.totalorder %s15, 3
      %p239 = pnand %p237, %p238
      %p240 = pneg %p239
      // Predicated region
      $region41: #{zrm_forward_pallas.1} parent=5 // pred_check
        _
      $region42: #{zrm_forward_pallas.1} parent=5 // pred_check_branch
        %242 = sbr.rel (%p239) target = $region44
      $region43: #{zrm_forward_pallas.1} parent=5 // pred_region
        %s243 = ssub.s32 %s15, 1
        %s244 = smul.u32 4, %s20
        %p245 = scmp.lt.s32.totalorder %s244, 7
        %s246 = scalar_select %p245, %s244, 7
        %s247 = smul.addr %s246, 2
        %s248 = scalar_lea.vmem %s0, %s247
        %p249 = pneg %p41
        %p250 = pneg %p38
        %s251 = smul.u32 4, %s20
        %p252 = scmp.lt.s32.totalorder %s251, 7
        %s253 = scalar_select %p252, %s251, 7
        %s254 = smul.addr %s253, 4
        %s255 = scalar_lea.vmem %s1, %s254
        %p256 = pneg %p67
        %p257 = pneg %p64
        %s258 = smul.u32 4, %s20
        %p259 = scmp.lt.s32.totalorder %s258, 7
        %s260 = scalar_select %p259, %s258, 7
        %s261 = smul.addr %s260, 4
        %s262 = scalar_lea.vmem %s2, %s261
        %p263 = pneg %p93
        %p264 = pneg %p90
        %p265 = pneg %p114
        %p266 = pneg %p111
        %p267 = pneg %p135
        %p268 = pneg %p132
        %p269 = pneg %p156
        %p270 = pneg %p153
        %p271 = pneg %p182
        %p272 = pneg %p179
        %s273 = sand.u32 %s169, 1
        %s274 = scalar_lea.sflag [#allocation3], %s273
        %s275 = sand.u32 %s169, 1
        %s276 = smul.addr %s275, 4
        %s277 = scalar_lea.vmem [#allocation2], %s276
        %s278 = smul.u32 4, %s20
        %p279 = scmp.lt.s32.totalorder %s278, 7
        %s280 = scalar_select %p279, %s278, 7
        %s281 = smul.addr %s280, 2
        %s282 = scalar_lea.vmem %s0, %s281
        %s283 = smul.u32 4, %s20
        %s284 = smul.u32 4, %s20
        %p285 = scmp.lt.s32.totalorder %s284, 7
        %s286 = scalar_select %p285, %s284, 7
        %s287 = smul.addr %s286, 4
        %s288 = scalar_lea.vmem %s1, %s287
        %s289 = smul.u32 4, %s20
        %s290 = smul.u32 4, %s20
        %p291 = scmp.lt.s32.totalorder %s290, 7
        %s292 = scalar_select %p291, %s290, 7
        %s293 = smul.addr %s292, 4
        %s294 = scalar_lea.vmem %s2, %s293
        %s295 = smul.u32 4, %s20
        %s296 = smul.u32 4, %s20
        %v298 = vld [vmem:[%s282] ss:$2 sm:$0xf]
        %s299 = scalar_lea.vmem %s282, 1
        %v300 = vld [vmem:[%s299] ss:$2 sm:$0xf]
        %v301 = vlaneseq
        %v302 = vshrl.u32 %v301, 7
        %v303 = vadd.s32 %v302, 8
        %v304 = vadd.s32 %v302, 16
        %v305 = vperm.slane %v298, 0
        %v306 = vperm.slane %v298, 1
        %v307 = vperm.slane %v298, 2
        %v308 = vperm.slane %v298, 3
        %vm309 = vcmp.eq.s32.totalorder %v302, %v305
        %vm310 = vcmp.eq.s32.totalorder %v302, %v306
        %vm311 = vcmp.eq.s32.totalorder %v302, %v307
        %vm312 = vcmp.eq.s32.totalorder %v302, %v308
        %vm313 = vcmp.eq.s32.totalorder %v303, %v305
        %vm314 = vcmp.eq.s32.totalorder %v303, %v306
        %vm315 = vcmp.eq.s32.totalorder %v303, %v307
        %vm316 = vcmp.eq.s32.totalorder %v303, %v308
        %vm317 = vcmp.eq.s32.totalorder %v304, %v305
        %vm318 = vcmp.eq.s32.totalorder %v304, %v306
        %vm319 = vcmp.eq.s32.totalorder %v304, %v307
        %vm320 = vcmp.eq.s32.totalorder %v304, %v308
        %v321 = vsel %vm309, 1, 0
        %v322 = vsel %vm310, 1, 0
        %v323 = vsel %vm311, 1, 0
        %v324 = vsel %vm312, 1, 0
        %v325 = vsel %vm313, 1, 0
        %v326 = vsel %vm314, 1, 0
        %v327 = vsel %vm315, 1, 0
        %v328 = vsel %vm316, 1, 0
        %v329 = vsel %vm317, 1, 0
        %v330 = vsel %vm318, 1, 0
        %v331 = vsel %vm319, 1, 0
        %v332 = vsel %vm320, 1, 0
        %v333 = vcvt.s32.f32 %v321
        %v334 = vcvt.s32.f32 %v322
        %v335 = vcvt.s32.f32 %v323
        %v336 = vcvt.s32.f32 %v324
        %v337 = vcvt.s32.f32 %v325
        %v338 = vcvt.s32.f32 %v326
        %v339 = vcvt.s32.f32 %v327
        %v340 = vcvt.s32.f32 %v328
        %v341 = vcvt.s32.f32 %v329
        %v342 = vcvt.s32.f32 %v330
        %v343 = vcvt.s32.f32 %v331
        %v344 = vcvt.s32.f32 %v332
        %v345 = vpack.c.bf16 %v337, %v333
        %v346 = vpack.c.bf16 %v338, %v334
        %v347 = vpack.c.bf16 %v339, %v335
        %v348 = vpack.c.bf16 %v340, %v336
        %v349 = vpack.c.bf16 %v341, %v341
        %v350 = vpack.c.bf16 %v342, %v342
        %v351 = vpack.c.bf16 %v343, %v343
        %v352 = vpack.c.bf16 %v344, %v344
        %v353 = vadd.s32 %v302, 24
        %v354 = vperm.slane %v300, 0
        %v355 = vperm.slane %v300, 1
        %v356 = vperm.slane %v300, 2
        %v357 = vperm.slane %v300, 3
        %vm358 = vcmp.eq.s32.totalorder %v302, %v354
        %vm359 = vcmp.eq.s32.totalorder %v302, %v355
        %vm360 = vcmp.eq.s32.totalorder %v302, %v356
        %vm361 = vcmp.eq.s32.totalorder %v302, %v357
        %vm362 = vcmp.eq.s32.totalorder %v303, %v354
        %vm363 = vcmp.eq.s32.totalorder %v303, %v355
        %vm364 = vcmp.eq.s32.totalorder %v303, %v356
        %vm365 = vcmp.eq.s32.totalorder %v303, %v357
        %vm366 = vcmp.eq.s32.totalorder %v304, %v354
        %vm367 = vcmp.eq.s32.totalorder %v304, %v355
        %vm368 = vcmp.eq.s32.totalorder %v304, %v356
        %vm369 = vcmp.eq.s32.totalorder %v304, %v357
        %vm370 = vcmp.eq.s32.totalorder %v353, %v354
        %vm371 = vcmp.eq.s32.totalorder %v353, %v355
        %vm372 = vcmp.eq.s32.totalorder %v353, %v356
        %vm373 = vcmp.eq.s32.totalorder %v353, %v357
        %v374 = vsel %vm358, 1, 0
        %v375 = vsel %vm359, 1, 0
        %v376 = vsel %vm360, 1, 0
        %v377 = vsel %vm361, 1, 0
        %v378 = vsel %vm362, 1, 0
        %v379 = vsel %vm363, 1, 0
        %v380 = vsel %vm364, 1, 0
        %v381 = vsel %vm365, 1, 0
        %v382 = vsel %vm366, 1, 0
        %v383 = vsel %vm367, 1, 0
        %v384 = vsel %vm368, 1, 0
        %v385 = vsel %vm369, 1, 0
        %v386 = vsel %vm370, 1, 0
        %v387 = vsel %vm371, 1, 0
        %v388 = vsel %vm372, 1, 0
        %v389 = vsel %vm373, 1, 0
        %v390 = vcvt.s32.f32 %v374
        %v391 = vcvt.s32.f32 %v375
        %v392 = vcvt.s32.f32 %v376
        %v393 = vcvt.s32.f32 %v377
        %v394 = vcvt.s32.f32 %v378
        %v395 = vcvt.s32.f32 %v379
        %v396 = vcvt.s32.f32 %v380
        %v397 = vcvt.s32.f32 %v381
        %v398 = vcvt.s32.f32 %v382
        %v399 = vcvt.s32.f32 %v383
        %v400 = vcvt.s32.f32 %v384
        %v401 = vcvt.s32.f32 %v385
        %v402 = vcvt.s32.f32 %v386
        %v403 = vcvt.s32.f32 %v387
        %v404 = vcvt.s32.f32 %v388
        %v405 = vcvt.s32.f32 %v389
        %v406 = vpack.c.bf16 %v394, %v390
        %v407 = vpack.c.bf16 %v395, %v391
        %v408 = vpack.c.bf16 %v396, %v392
        %v409 = vpack.c.bf16 %v397, %v393
        %v410 = vpack.c.bf16 %v402, %v398
        %v411 = vpack.c.bf16 %v403, %v399
        %v412 = vpack.c.bf16 %v404, %v400
        %v413 = vpack.c.bf16 %v405, %v401
        %v414 = vld [vmem:[%s3] sm:$0xf]
        %v415 = vld [vmem:[%s3 + $0x4] sm:$0x3]
        %v418 = vunpack.c.l.b16 %v414
        %v419 = vunpack.c.l.b16 %v415
        %v420 = vpack.c.b16 %v419, %v418
        %vm421 = vcmask 162816
        %v423 = vsel %vm421, %v420, 0
        %vm425 = vcmask 1041408
        %v427 = vsel %vm425, %v349, 0
        %v430 = vsel %vm425, %v350, 0
        %v433 = vsel %vm425, %v351, 0
        %v436 = vsel %vm425, %v352, 0
        %438 = vmatpush.bf16.msra.mxu0 0
        %439 = vmatpush.bf16.msra.mxu0 0
        %440 = vmatpush.bf16.msra.mxu0 0
        %441 = vmatpush.bf16.msra.mxu0 0
        %442 = vmatpush.bf16.msra.mxu0 0
        %443 = vmatpush.bf16.msra.mxu0 0
        %444 = vmatpush.bf16.msra.mxu0 %v427
        %445 = vmatpush.bf16.msra.mxu0 %v345
        %446 = vmatmul.bf16.gmra.mxu0 %v423
        %v447 = vpop.f32.mrf.mxu0
        %v448 = vadd.f32 0.0, %v447
        %v449 = vpop.f32.mrf.mxu0
        %v450 = vadd.f32 0.0, %v449
        %451 = vdwg.mxu0
        %452 = vmatpush.bf16.msra.mxu0 0
        %453 = vmatpush.bf16.msra.mxu0 0
        %454 = vmatpush.bf16.msra.mxu0 0
        %455 = vmatpush.bf16.msra.mxu0 0
        %456 = vmatpush.bf16.msra.mxu0 0
        %457 = vmatpush.bf16.msra.mxu0 0
        %458 = vmatpush.bf16.msra.mxu0 %v430
        %459 = vmatpush.bf16.msra.mxu0 %v346
        %460 = vmatmul.bf16.gmra.mxu0 %v423
        %v461 = vpop.f32.mrf.mxu0
        %v462 = vadd.f32 0.0, %v461
        %v463 = vpop.f32.mrf.mxu0
        %v464 = vadd.f32 0.0, %v463
        %465 = vdwg.mxu0
        %466 = vmatpush.bf16.msra.mxu0 0
        %467 = vmatpush.bf16.msra.mxu0 0
        %468 = vmatpush.bf16.msra.mxu0 0
        %469 = vmatpush.bf16.msra.mxu0 0
        %470 = vmatpush.bf16.msra.mxu0 0
        %471 = vmatpush.bf16.msra.mxu0 0
        %472 = vmatpush.bf16.msra.mxu0 %v433
        %473 = vmatpush.bf16.msra.mxu0 %v347
        %474 = vmatmul.bf16.gmra.mxu0 %v423
        %v475 = vpop.f32.mrf.mxu0
        %v476 = vadd.f32 0.0, %v475
        %v477 = vpop.f32.mrf.mxu0
        %v478 = vadd.f32 0.0, %v477
        %479 = vdwg.mxu0
        %480 = vmatpush.bf16.msra.mxu0 0
        %481 = vmatpush.bf16.msra.mxu0 0
        %482 = vmatpush.bf16.msra.mxu0 0
        %483 = vmatpush.bf16.msra.mxu0 0
        %484 = vmatpush.bf16.msra.mxu0 0
        %485 = vmatpush.bf16.msra.mxu0 0
        %486 = vmatpush.bf16.msra.mxu0 %v436
        %487 = vmatpush.bf16.msra.mxu0 %v348
        %488 = vmatmul.bf16.gmra.mxu0 %v423
        %v489 = vpop.f32.mrf.mxu0
        %v490 = vadd.f32 0.0, %v489
        %v491 = vpop.f32.mrf.mxu0
        %v492 = vadd.f32 0.0, %v491
        %493 = vdwg.mxu0
        %v494 = vld [vmem:[%s4] sm:$0xf]
        %v495 = vld [vmem:[%s4 + $0x4] sm:$0x3]
        %v498 = vunpack.c.l.b16 %v494
        %v499 = vunpack.c.l.b16 %v495
        %v500 = vpack.c.b16 %v499, %v498
        %vm501 = vcmask 244736
        %v503 = vsel %vm501, %v500, 0
        %vm505 = vcmask 1046528
        %v507 = vsel %vm505, %v410, 0
        %v510 = vsel %vm505, %v411, 0
        %v513 = vsel %vm505, %v412, 0
        %v516 = vsel %vm505, %v413, 0
        %518 = vmatpush.bf16.msra.mxu0 0
        %519 = vmatpush.bf16.msra.mxu0 0
        %520 = vmatpush.bf16.msra.mxu0 0
        %521 = vmatpush.bf16.msra.mxu0 0
        %522 = vmatpush.bf16.msra.mxu0 0
        %523 = vmatpush.bf16.msra.mxu0 0
        %524 = vmatpush.bf16.msra.mxu0 %v507
        %525 = vmatpush.bf16.msra.mxu0 %v406
        %526 = vmatmul.bf16.gmra.mxu0 %v503
        %v527 = vpop.f32.mrf.mxu0
        %v528 = vadd.f32 0.0, %v527
        %v529 = vpop.f32.mrf.mxu0
        %v530 = vadd.f32 0.0, %v529
        %531 = vdwg.mxu0
        %532 = vmatpush.bf16.msra.mxu0 0
        %533 = vmatpush.bf16.msra.mxu0 0
        %534 = vmatpush.bf16.msra.mxu0 0
        %535 = vmatpush.bf16.msra.mxu0 0
        %536 = vmatpush.bf16.msra.mxu0 0
        %537 = vmatpush.bf16.msra.mxu0 0
        %538 = vmatpush.bf16.msra.mxu0 %v510
        %539 = vmatpush.bf16.msra.mxu0 %v407
        %540 = vmatmul.bf16.gmra.mxu0 %v503
        %v541 = vpop.f32.mrf.mxu0
        %v542 = vadd.f32 0.0, %v541
        %v543 = vpop.f32.mrf.mxu0
        %v544 = vadd.f32 0.0, %v543
        %545 = vdwg.mxu0
        %546 = vmatpush.bf16.msra.mxu0 0
        %547 = vmatpush.bf16.msra.mxu0 0
        %548 = vmatpush.bf16.msra.mxu0 0
        %549 = vmatpush.bf16.msra.mxu0 0
        %550 = vmatpush.bf16.msra.mxu0 0
        %551 = vmatpush.bf16.msra.mxu0 0
        %552 = vmatpush.bf16.msra.mxu0 %v513
        %553 = vmatpush.bf16.msra.mxu0 %v408
        %554 = vmatmul.bf16.gmra.mxu0 %v503
        %v555 = vpop.f32.mrf.mxu0
        %v556 = vadd.f32 0.0, %v555
        %v557 = vpop.f32.mrf.mxu0
        %v558 = vadd.f32 0.0, %v557
        %559 = vdwg.mxu0
        %560 = vmatpush.bf16.msra.mxu0 0
        %561 = vmatpush.bf16.msra.mxu0 0
        %562 = vmatpush.bf16.msra.mxu0 0
        %563 = vmatpush.bf16.msra.mxu0 0
        %564 = vmatpush.bf16.msra.mxu0 0
        %565 = vmatpush.bf16.msra.mxu0 0
        %566 = vmatpush.bf16.msra.mxu0 %v516
        %567 = vmatpush.bf16.msra.mxu0 %v409
        %568 = vmatmul.bf16.gmra.mxu0 %v503
        %v569 = vpop.f32.mrf.mxu0
        %v570 = vadd.f32 0.0, %v569
        %v571 = vpop.f32.mrf.mxu0
        %v572 = vadd.f32 0.0, %v571
        %573 = vdwg.mxu0
        %v574 = vmul.f32 %v448, %v528
        %v575 = vmul.f32 %v462, %v542
        %v576 = vmul.f32 %v476, %v556
        %v577 = vmul.f32 %v490, %v570
        %v578 = vmul.f32 %v450, %v530
        %v579 = vmul.f32 %v464, %v544
        %v580 = vmul.f32 %v478, %v558
        %v581 = vmul.f32 %v492, %v572
        %v582 = vpack.c.bf16 %v578, %v574
        %v583 = vpack.c.bf16 %v579, %v575
        %v584 = vpack.c.bf16 %v580, %v576
        %v585 = vpack.c.bf16 %v581, %v577
        %v586 = vadd.f32 %v450, %v530
        %v587 = vadd.f32 %v464, %v544
        %v588 = vadd.f32 %v478, %v558
        %v589 = vadd.f32 %v492, %v572
        %v590 = vld [vmem:[%s5] sm:$0xf]
        %v591 = vld [vmem:[%s5 + $0x30] sm:$0xf]
        %v592 = vld [vmem:[%s288] sm:$0x77]
        %v593 = vld [vmem:[%s288 + $0x8] sm:$0x77]
        %v594 = vld [vmem:[%s5 + $0x4] sm:$0xf]
        %v595 = vld [vmem:[%s5 + $0x34] sm:$0xf]
        %v596 = vld [vmem:[%s294] sm:$0x77]
        %v597 = vld [vmem:[%s294 + $0x8] sm:$0x77]
        %v600 = vunpack.c.l.b16 %v594
        %v601 = vunpack.c.l.b16 %v595
        %v602 = vpack.c.b16 %v601, %v600
        %v605 = vunpack.c.l.b16 %v596
        %v606 = vunpack.c.h.b16 %v596
        %v607 = vunpack.c.l.b16 %v597
        %v608 = vunpack.c.h.b16 %v597
        %v609 = vpack.c.b16 %v605, %v605
        %v610 = vpack.c.b16 %v606, %v606
        %v611 = vpack.c.b16 %v607, %v607
        %v612 = vpack.c.b16 %v608, %v608
        %vm613 = vcmask 39936
        %v615 = vsel %vm613, %v602, 0
        %vm617 = vcmask 1042432
        %v618 = vsel %vm425, 4294967295, 65535
        %v619 = vsel %vm617, %v618, 0
        %v621 = vand.u32 %v609, %v619
        %v624 = vand.u32 %v610, %v619
        %v627 = vand.u32 %v611, %v619
        %v630 = vand.u32 %v612, %v619
        %632 = vmatpush.bf16.msra.mxu0 0
        %633 = vmatpush.bf16.msra.mxu0 0
        %634 = vmatpush.bf16.msra.mxu0 0
        %635 = vmatpush.bf16.msra.mxu0 0
        %636 = vmatpush.bf16.msra.mxu0 0
        %637 = vmatpush.bf16.msra.mxu0 0
        %638 = vmatpush.bf16.msra.mxu0 0
        %639 = vmatpush.bf16.msra.mxu0 %v621
        %640 = vmatmul.bf16.gmra.mxu0 %v615
        %v641 = vpop.f32.mrf.mxu0
        %v642 = vadd.f32 0.0, %v641
        %v643 = vpop.f32.mrf.mxu0
        %v644 = vadd.f32 0.0, %v643
        %645 = vdwg.mxu0
        %646 = vmatpush.bf16.msra.mxu0 0
        %647 = vmatpush.bf16.msra.mxu0 0
        %648 = vmatpush.bf16.msra.mxu0 0
        %649 = vmatpush.bf16.msra.mxu0 0
        %650 = vmatpush.bf16.msra.mxu0 0
        %651 = vmatpush.bf16.msra.mxu0 0
        %652 = vmatpush.bf16.msra.mxu0 0
        %653 = vmatpush.bf16.msra.mxu0 %v624
        %654 = vmatmul.bf16.gmra.mxu0 %v615
        %v655 = vpop.f32.mrf.mxu0
        %v656 = vadd.f32 0.0, %v655
        %v657 = vpop.f32.mrf.mxu0
        %v658 = vadd.f32 0.0, %v657
        %659 = vdwg.mxu0
        %660 = vmatpush.bf16.msra.mxu0 0
        %661 = vmatpush.bf16.msra.mxu0 0
        %662 = vmatpush.bf16.msra.mxu0 0
        %663 = vmatpush.bf16.msra.mxu0 0
        %664 = vmatpush.bf16.msra.mxu0 0
        %665 = vmatpush.bf16.msra.mxu0 0
        %666 = vmatpush.bf16.msra.mxu0 0
        %667 = vmatpush.bf16.msra.mxu0 %v627
        %668 = vmatmul.bf16.gmra.mxu0 %v615
        %v669 = vpop.f32.mrf.mxu0
        %v670 = vadd.f32 0.0, %v669
        %v671 = vpop.f32.mrf.mxu0
        %v672 = vadd.f32 0.0, %v671
        %673 = vdwg.mxu0
        %674 = vmatpush.bf16.msra.mxu0 0
        %675 = vmatpush.bf16.msra.mxu0 0
        %676 = vmatpush.bf16.msra.mxu0 0
        %677 = vmatpush.bf16.msra.mxu0 0
        %678 = vmatpush.bf16.msra.mxu0 0
        %679 = vmatpush.bf16.msra.mxu0 0
        %680 = vmatpush.bf16.msra.mxu0 0
        %681 = vmatpush.bf16.msra.mxu0 %v630
        %682 = vmatmul.bf16.gmra.mxu0 %v615
        %v683 = vpop.f32.mrf.mxu0
        %v684 = vadd.f32 0.0, %v683
        %v685 = vpop.f32.mrf.mxu0
        %v686 = vadd.f32 0.0, %v685
        %687 = vdwg.mxu0
        %v690 = vunpack.c.l.b16 %v590
        %v691 = vunpack.c.l.b16 %v591
        %v692 = vpack.c.b16 %v691, %v690
        %v695 = vunpack.c.l.b16 %v592
        %v696 = vunpack.c.h.b16 %v592
        %v697 = vunpack.c.l.b16 %v593
        %v698 = vunpack.c.h.b16 %v593
        %v699 = vpack.c.b16 %v695, %v695
        %v700 = vpack.c.b16 %v696, %v696
        %v701 = vpack.c.b16 %v697, %v697
        %v702 = vpack.c.b16 %v698, %v698
        %vm703 = vcmask 48128
        %v705 = vsel %vm703, %v692, 0
        %v708 = vsel %vm617, %v699, 0
        %v711 = vsel %vm617, %v700, 0
        %v714 = vsel %vm617, %v701, 0
        %v717 = vsel %vm617, %v702, 0
        %719 = vmatpush.bf16.msra.mxu0 0
        %720 = vmatpush.bf16.msra.mxu0 0
        %721 = vmatpush.bf16.msra.mxu0 0
        %722 = vmatpush.bf16.msra.mxu0 0
        %723 = vmatpush.bf16.msra.mxu0 0
        %724 = vmatpush.bf16.msra.mxu0 0
        %725 = vmatpush.bf16.msra.mxu0 0
        %726 = vmatpush.bf16.msra.mxu0 %v708
        %727 = vmatmul.bf16.gmra.mxu0 %v705
        %v728 = vpop.f32.mrf.mxu0
        %v729 = vadd.f32 %v642, %v728
        %v730 = vpop.f32.mrf.mxu0
        %v731 = vadd.f32 %v644, %v730
        %732 = vdwg.mxu0
        %733 = vmatpush.bf16.msra.mxu0 0
        %734 = vmatpush.bf16.msra.mxu0 0
        %735 = vmatpush.bf16.msra.mxu0 0
        %736 = vmatpush.bf16.msra.mxu0 0
        %737 = vmatpush.bf16.msra.mxu0 0
        %738 = vmatpush.bf16.msra.mxu0 0
        %739 = vmatpush.bf16.msra.mxu0 0
        %740 = vmatpush.bf16.msra.mxu0 %v711
        %741 = vmatmul.bf16.gmra.mxu0 %v705
        %v742 = vpop.f32.mrf.mxu0
        %v743 = vadd.f32 %v656, %v742
        %v744 = vpop.f32.mrf.mxu0
        %v745 = vadd.f32 %v658, %v744
        %746 = vdwg.mxu0
        %747 = vmatpush.bf16.msra.mxu0 0
        %748 = vmatpush.bf16.msra.mxu0 0
        %749 = vmatpush.bf16.msra.mxu0 0
        %750 = vmatpush.bf16.msra.mxu0 0
        %751 = vmatpush.bf16.msra.mxu0 0
        %752 = vmatpush.bf16.msra.mxu0 0
        %753 = vmatpush.bf16.msra.mxu0 0
        %754 = vmatpush.bf16.msra.mxu0 %v714
        %755 = vmatmul.bf16.gmra.mxu0 %v705
        %v756 = vpop.f32.mrf.mxu0
        %v757 = vadd.f32 %v670, %v756
        %v758 = vpop.f32.mrf.mxu0
        %v759 = vadd.f32 %v672, %v758
        %760 = vdwg.mxu0
        %761 = vmatpush.bf16.msra.mxu0 0
        %762 = vmatpush.bf16.msra.mxu0 0
        %763 = vmatpush.bf16.msra.mxu0 0
        %764 = vmatpush.bf16.msra.mxu0 0
        %765 = vmatpush.bf16.msra.mxu0 0
        %766 = vmatpush.bf16.msra.mxu0 0
        %767 = vmatpush.bf16.msra.mxu0 0
        %768 = vmatpush.bf16.msra.mxu0 %v717
        %769 = vmatmul.bf16.gmra.mxu0 %v705
        %v770 = vpop.f32.mrf.mxu0
        %v771 = vadd.f32 %v684, %v770
        %v772 = vpop.f32.mrf.mxu0
        %v773 = vadd.f32 %v686, %v772
        %774 = vdwg.mxu0
        %v775 = vld [vmem:[%s5 + $0x8] sm:$0xf]
        %v776 = vld [vmem:[%s5 + $0x38] sm:$0xf]
        %v777 = vunpack.c.l.bf16 %v775
        %v778 = vunpack.c.l.bf16 %v776
        %780 = vset.pattern.permute.xlu0 0
        %781 = vperm.xlu0 %780, %v777
        %v782 = vpop.permute.xlu0 %781
        %785 = vset.pattern.permute.xlu0 0
        %786 = vperm.xlu0 %785, %v778
        %v787 = vpop.permute.xlu0 %786
        %v789 = vadd.f32 %v729, %v782
        %v790 = vadd.f32 %v743, %v782
        %v791 = vadd.f32 %v757, %v782
        %v792 = vadd.f32 %v771, %v782
        %v793 = vadd.f32 %v731, %v787
        %v794 = vadd.f32 %v745, %v787
        %v795 = vadd.f32 %v759, %v787
        %v796 = vadd.f32 %v773, %v787
        %v797 = vmax.f32 %v789, 0.0
        %v798 = vmax.f32 %v790, 0.0
        %v799 = vmax.f32 %v791, 0.0
        %v800 = vmax.f32 %v792, 0.0
        %v801 = vmax.f32 %v793, 0.0
        %v802 = vmax.f32 %v794, 0.0
        %v803 = vmax.f32 %v795, 0.0
        %v804 = vmax.f32 %v796, 0.0
        %v805 = vpack.c.bf16 %v801, %v797
        %v806 = vpack.c.bf16 %v802, %v798
        %v807 = vpack.c.bf16 %v803, %v799
        %v808 = vpack.c.bf16 %v804, %v800
        %v809 = vld [vmem:[%s5 + $0xc] sm:$0xf]
        %v810 = vld [vmem:[%s5 + $0x10] sm:$0xf]
        %v811 = vunpack.c.l.bf16 %v810
        %813 = vset.pattern.permute.xlu0 0
        %814 = vperm.xlu0 %813, %v811
        %v815 = vpop.permute.xlu0 %814
        %vm817 = vcmask 130048
        %v819 = vsel %vm817, %v809, 0
        %821 = vmatpush.bf16.msra.mxu0 0
        %822 = vmatpush.bf16.msra.mxu0 0
        %823 = vmatpush.bf16.msra.mxu0 0
        %824 = vmatpush.bf16.msra.mxu0 0
        %825 = vmatpush.bf16.msra.mxu0 0
        %826 = vmatpush.bf16.msra.mxu0 0
        %827 = vmatpush.bf16.msra.mxu0 0
        %828 = vmatpush.bf16.msra.mxu0 %v805
        %829 = vmatmul.bf16.gmra.mxu0 %v819
        %v830 = vpop.f32.mrf.mxu0
        %v831 = vadd.f32 %v815, %v830
        %v832 = vpop.f32.mrf.mxu0
        %833 = vdwg.mxu0
        %834 = vmatpush.bf16.msra.mxu0 0
        %835 = vmatpush.bf16.msra.mxu0 0
        %836 = vmatpush.bf16.msra.mxu0 0
        %837 = vmatpush.bf16.msra.mxu0 0
        %838 = vmatpush.bf16.msra.mxu0 0
        %839 = vmatpush.bf16.msra.mxu0 0
        %840 = vmatpush.bf16.msra.mxu0 0
        %841 = vmatpush.bf16.msra.mxu0 %v806
        %842 = vmatmul.bf16.gmra.mxu0 %v819
        %v843 = vpop.f32.mrf.mxu0
        %v844 = vadd.f32 %v815, %v843
        %v845 = vpop.f32.mrf.mxu0
        %846 = vdwg.mxu0
        %847 = vmatpush.bf16.msra.mxu0 0
        %848 = vmatpush.bf16.msra.mxu0 0
        %849 = vmatpush.bf16.msra.mxu0 0
        %850 = vmatpush.bf16.msra.mxu0 0
        %851 = vmatpush.bf16.msra.mxu0 0
        %852 = vmatpush.bf16.msra.mxu0 0
        %853 = vmatpush.bf16.msra.mxu0 0
        %854 = vmatpush.bf16.msra.mxu0 %v807
        %855 = vmatmul.bf16.gmra.mxu0 %v819
        %v856 = vpop.f32.mrf.mxu0
        %v857 = vadd.f32 %v815, %v856
        %v858 = vpop.f32.mrf.mxu0
        %859 = vdwg.mxu0
        %860 = vmatpush.bf16.msra.mxu0 0
        %861 = vmatpush.bf16.msra.mxu0 0
        %862 = vmatpush.bf16.msra.mxu0 0
        %863 = vmatpush.bf16.msra.mxu0 0
        %864 = vmatpush.bf16.msra.mxu0 0
        %865 = vmatpush.bf16.msra.mxu0 0
        %866 = vmatpush.bf16.msra.mxu0 0
        %867 = vmatpush.bf16.msra.mxu0 %v808
        %868 = vmatmul.bf16.gmra.mxu0 %v819
        %v869 = vpop.f32.mrf.mxu0
        %v870 = vadd.f32 %v815, %v869
        %v871 = vpop.f32.mrf.mxu0
        %872 = vdwg.mxu0
        %v873 = vmax.f32 %v831, 0.0
        %v874 = vmax.f32 %v844, 0.0
        %v875 = vmax.f32 %v857, 0.0
        %v876 = vmax.f32 %v870, 0.0
        %v877 = vpack.c.bf16 %v873, %v873
        %v878 = vpack.c.bf16 %v874, %v874
        %v879 = vpack.c.bf16 %v875, %v875
        %v880 = vpack.c.bf16 %v876, %v876
        %v881 = vld [vmem:[%s5 + $0x14] sm:$0xf]
        %v882 = vld [vmem:[%s5 + $0x18] sm:$0xf]
        %vm883 = vcmask 80896
        %v885 = vsel %vm883, %v882, 0
        %vm887 = vcmask 1044480
        %v889 = vsel %vm887, %v582, 0
        %v892 = vsel %vm887, %v583, 0
        %v895 = vsel %vm887, %v584, 0
        %v898 = vsel %vm887, %v585, 0
        %900 = vmatpush.bf16.msra.mxu0 0
        %901 = vmatpush.bf16.msra.mxu0 0
        %902 = vmatpush.bf16.msra.mxu0 0
        %903 = vmatpush.bf16.msra.mxu0 0
        %904 = vmatpush.bf16.msra.mxu0 0
        %905 = vmatpush.bf16.msra.mxu0 0
        %906 = vmatpush.bf16.msra.mxu0 0
        %907 = vmatpush.bf16.msra.mxu0 %v889
        %908 = vmatmul.bf16.gmra.mxu0 %v885
        %v909 = vpop.f32.mrf.mxu0
        %v910 = vadd.f32 0.0, %v909
        %v911 = vpop.f32.mrf.mxu0
        %912 = vdwg.mxu0
        %913 = vmatpush.bf16.msra.mxu0 0
        %914 = vmatpush.bf16.msra.mxu0 0
        %915 = vmatpush.bf16.msra.mxu0 0
        %916 = vmatpush.bf16.msra.mxu0 0
        %917 = vmatpush.bf16.msra.mxu0 0
        %918 = vmatpush.bf16.msra.mxu0 0
        %919 = vmatpush.bf16.msra.mxu0 0
        %920 = vmatpush.bf16.msra.mxu0 %v892
        %921 = vmatmul.bf16.gmra.mxu0 %v885
        %v922 = vpop.f32.mrf.mxu0
        %v923 = vadd.f32 0.0, %v922
        %v924 = vpop.f32.mrf.mxu0
        %925 = vdwg.mxu0
        %926 = vmatpush.bf16.msra.mxu0 0
        %927 = vmatpush.bf16.msra.mxu0 0
        %928 = vmatpush.bf16.msra.mxu0 0
        %929 = vmatpush.bf16.msra.mxu0 0
        %930 = vmatpush.bf16.msra.mxu0 0
        %931 = vmatpush.bf16.msra.mxu0 0
        %932 = vmatpush.bf16.msra.mxu0 0
        %933 = vmatpush.bf16.msra.mxu0 %v895
        %934 = vmatmul.bf16.gmra.mxu0 %v885
        %v935 = vpop.f32.mrf.mxu0
        %v936 = vadd.f32 0.0, %v935
        %v937 = vpop.f32.mrf.mxu0
        %938 = vdwg.mxu0
        %939 = vmatpush.bf16.msra.mxu0 0
        %940 = vmatpush.bf16.msra.mxu0 0
        %941 = vmatpush.bf16.msra.mxu0 0
        %942 = vmatpush.bf16.msra.mxu0 0
        %943 = vmatpush.bf16.msra.mxu0 0
        %944 = vmatpush.bf16.msra.mxu0 0
        %945 = vmatpush.bf16.msra.mxu0 0
        %946 = vmatpush.bf16.msra.mxu0 %v898
        %947 = vmatmul.bf16.gmra.mxu0 %v885
        %v948 = vpop.f32.mrf.mxu0
        %v949 = vadd.f32 0.0, %v948
        %v950 = vpop.f32.mrf.mxu0
        %951 = vdwg.mxu0
        %vm952 = vcmask 64512
        %v954 = vsel %vm952, %v881, 0
        %vm956 = vcmask 1043456
        %v958 = vsel %vm956, %v877, 0
        %v961 = vsel %vm956, %v878, 0
        %v964 = vsel %vm956, %v879, 0
        %v967 = vsel %vm956, %v880, 0
        %969 = vmatpush.bf16.msra.mxu0 0
        %970 = vmatpush.bf16.msra.mxu0 0
        %971 = vmatpush.bf16.msra.mxu0 0
        %972 = vmatpush.bf16.msra.mxu0 0
        %973 = vmatpush.bf16.msra.mxu0 0
        %974 = vmatpush.bf16.msra.mxu0 0
        %975 = vmatpush.bf16.msra.mxu0 0
        %976 = vmatpush.bf16.msra.mxu0 %v958
        %977 = vmatmul.bf16.gmra.mxu0 %v954
        %v978 = vpop.f32.mrf.mxu0
        %v979 = vadd.f32 %v910, %v978
        %v980 = vpop.f32.mrf.mxu0
        %981 = vdwg.mxu0
        %982 = vmatpush.bf16.msra.mxu0 0
        %983 = vmatpush.bf16.msra.mxu0 0
        %984 = vmatpush.bf16.msra.mxu0 0
        %985 = vmatpush.bf16.msra.mxu0 0
        %986 = vmatpush.bf16.msra.mxu0 0
        %987 = vmatpush.bf16.msra.mxu0 0
        %988 = vmatpush.bf16.msra.mxu0 0
        %989 = vmatpush.bf16.msra.mxu0 %v961
        %990 = vmatmul.bf16.gmra.mxu0 %v954
        %v991 = vpop.f32.mrf.mxu0
        %v992 = vadd.f32 %v923, %v991
        %v993 = vpop.f32.mrf.mxu0
        %994 = vdwg.mxu0
        %995 = vmatpush.bf16.msra.mxu0 0
        %996 = vmatpush.bf16.msra.mxu0 0
        %997 = vmatpush.bf16.msra.mxu0 0
        %998 = vmatpush.bf16.msra.mxu0 0
        %999 = vmatpush.bf16.msra.mxu0 0
        %1000 = vmatpush.bf16.msra.mxu0 0
        %1001 = vmatpush.bf16.msra.mxu0 0
        %1002 = vmatpush.bf16.msra.mxu0 %v964
        %1003 = vmatmul.bf16.gmra.mxu0 %v954
        %v1004 = vpop.f32.mrf.mxu0
        %v1005 = vadd.f32 %v936, %v1004
        %v1006 = vpop.f32.mrf.mxu0
        %1007 = vdwg.mxu0
        %1008 = vmatpush.bf16.msra.mxu0 0
        %1009 = vmatpush.bf16.msra.mxu0 0
        %1010 = vmatpush.bf16.msra.mxu0 0
        %1011 = vmatpush.bf16.msra.mxu0 0
        %1012 = vmatpush.bf16.msra.mxu0 0
        %1013 = vmatpush.bf16.msra.mxu0 0
        %1014 = vmatpush.bf16.msra.mxu0 0
        %1015 = vmatpush.bf16.msra.mxu0 %v967
        %1016 = vmatmul.bf16.gmra.mxu0 %v954
        %v1017 = vpop.f32.mrf.mxu0
        %v1018 = vadd.f32 %v949, %v1017
        %v1019 = vpop.f32.mrf.mxu0
        %1020 = vdwg.mxu0
        %v1021 = vld [vmem:[%s5 + $0x1c] sm:$0xf]
        %v1022 = vunpack.c.l.bf16 %v1021
        %1024 = vset.pattern.permute.xlu0 0
        %1025 = vperm.xlu0 %1024, %v1022
        %v1026 = vpop.permute.xlu0 %1025
        %v1028 = vadd.f32 %v979, %v1026
        %v1029 = vadd.f32 %v992, %v1026
        %v1030 = vadd.f32 %v1005, %v1026
        %v1031 = vadd.f32 %v1018, %v1026
        %v1032 = vmax.f32 %v1028, 0.0
        %v1033 = vmax.f32 %v1029, 0.0
        %v1034 = vmax.f32 %v1030, 0.0
        %v1035 = vmax.f32 %v1031, 0.0
        %v1036 = vpack.c.bf16 %v1032, %v1032
        %v1037 = vpack.c.bf16 %v1033, %v1033
        %v1038 = vpack.c.bf16 %v1034, %v1034
        %v1039 = vpack.c.bf16 %v1035, %v1035
        %v1040 = vld [vmem:[%s5 + $0x20] sm:$0x3]
        %v1041 = vld [vmem:[%s5 + $0x24] sm:$0x3]
        %v1042 = vunpack.c.l.bf16 %v1041
        %1044 = vset.pattern.permute.xlu0 0
        %1045 = vperm.xlu0 %1044, %v1042
        %v1046 = vpop.permute.xlu0 %1045
        %v1049 = vsel %vm952, %v1040, 0
        %v1052 = vsel %vm956, %v1036, 0
        %v1055 = vsel %vm956, %v1037, 0
        %v1058 = vsel %vm956, %v1038, 0
        %v1061 = vsel %vm956, %v1039, 0
        %1063 = vmatpush.bf16.msra.mxu0 0
        %1064 = vmatpush.bf16.msra.mxu0 0
        %1065 = vmatpush.bf16.msra.mxu0 0
        %1066 = vmatpush.bf16.msra.mxu0 0
        %1067 = vmatpush.bf16.msra.mxu0 0
        %1068 = vmatpush.bf16.msra.mxu0 0
        %1069 = vmatpush.bf16.msra.mxu0 0
        %1070 = vmatpush.bf16.msra.mxu0 %v1052
        %1071 = vmatmul.bf16.gmra.mxu0 %v1049
        %v1072 = vpop.f32.mrf.mxu0
        %v1073 = vadd.f32 %v1046, %v1072
        %v1074 = vpop.f32.mrf.mxu0
        %1075 = vdwg.mxu0
        %1076 = vmatpush.bf16.msra.mxu0 0
        %1077 = vmatpush.bf16.msra.mxu0 0
        %1078 = vmatpush.bf16.msra.mxu0 0
        %1079 = vmatpush.bf16.msra.mxu0 0
        %1080 = vmatpush.bf16.msra.mxu0 0
        %1081 = vmatpush.bf16.msra.mxu0 0
        %1082 = vmatpush.bf16.msra.mxu0 0
        %1083 = vmatpush.bf16.msra.mxu0 %v1055
        %1084 = vmatmul.bf16.gmra.mxu0 %v1049
        %v1085 = vpop.f32.mrf.mxu0
        %v1086 = vadd.f32 %v1046, %v1085
        %v1087 = vpop.f32.mrf.mxu0
        %1088 = vdwg.mxu0
        %1089 = vmatpush.bf16.msra.mxu0 0
        %1090 = vmatpush.bf16.msra.mxu0 0
        %1091 = vmatpush.bf16.msra.mxu0 0
        %1092 = vmatpush.bf16.msra.mxu0 0
        %1093 = vmatpush.bf16.msra.mxu0 0
        %1094 = vmatpush.bf16.msra.mxu0 0
        %1095 = vmatpush.bf16.msra.mxu0 0
        %1096 = vmatpush.bf16.msra.mxu0 %v1058
        %1097 = vmatmul.bf16.gmra.mxu0 %v1049
        %v1098 = vpop.f32.mrf.mxu0
        %v1099 = vadd.f32 %v1046, %v1098
        %v1100 = vpop.f32.mrf.mxu0
        %1101 = vdwg.mxu0
        %1102 = vmatpush.bf16.msra.mxu0 0
        %1103 = vmatpush.bf16.msra.mxu0 0
        %1104 = vmatpush.bf16.msra.mxu0 0
        %1105 = vmatpush.bf16.msra.mxu0 0
        %1106 = vmatpush.bf16.msra.mxu0 0
        %1107 = vmatpush.bf16.msra.mxu0 0
        %1108 = vmatpush.bf16.msra.mxu0 0
        %1109 = vmatpush.bf16.msra.mxu0 %v1061
        %1110 = vmatmul.bf16.gmra.mxu0 %v1049
        %v1111 = vpop.f32.mrf.mxu0
        %v1112 = vadd.f32 %v1046, %v1111
        %v1113 = vpop.f32.mrf.mxu0
        %1114 = vdwg.mxu0
        %v1115 = vmax.f32 %v1073, 0.0
        %v1116 = vmax.f32 %v1086, 0.0
        %v1117 = vmax.f32 %v1099, 0.0
        %v1118 = vmax.f32 %v1112, 0.0
        %v1119 = vpack.c.bf16 %v1115, %v1115
        %v1120 = vpack.c.bf16 %v1116, %v1116
        %v1121 = vpack.c.bf16 %v1117, %v1117
        %v1122 = vpack.c.bf16 %v1118, %v1118
        %v1123 = vld [vmem:[%s5 + $0x28] sm:$0x1]
        %v1124 = vld [vmem:[%s5 + $0x2c] sm:$0x1]
        %v1125 = vunpack.c.l.bf16 %v1124
        %1127 = vset.pattern.permute.xlu0 0
        %1128 = vperm.xlu0 %1127, %v1125
        %v1129 = vpop.permute.xlu0 %1128
        %vm1131 = vcmask 31744
        %v1133 = vsel %vm1131, %v1123, 0
        %v1136 = vsel %vm425, %v1119, 0
        %v1139 = vsel %vm425, %v1120, 0
        %v1142 = vsel %vm425, %v1121, 0
        %v1145 = vsel %vm425, %v1122, 0
        %1147 = vmatpush.bf16.msra.mxu0 0
        %1148 = vmatpush.bf16.msra.mxu0 0
        %1149 = vmatpush.bf16.msra.mxu0 0
        %1150 = vmatpush.bf16.msra.mxu0 0
        %1151 = vmatpush.bf16.msra.mxu0 0
        %1152 = vmatpush.bf16.msra.mxu0 0
        %1153 = vmatpush.bf16.msra.mxu0 0
        %1154 = vmatpush.bf16.msra.mxu0 %v1136
        %1155 = vmatmul.bf16.gmra.mxu0 %v1133
        %v1156 = vpop.f32.mrf.mxu0
        %v1157 = vadd.f32 %v1129, %v1156
        %v1158 = vpop.f32.mrf.mxu0
        %1159 = vdwg.mxu0
        %1160 = vmatpush.bf16.msra.mxu0 0
        %1161 = vmatpush.bf16.msra.mxu0 0
        %1162 = vmatpush.bf16.msra.mxu0 0
        %1163 = vmatpush.bf16.msra.mxu0 0
        %1164 = vmatpush.bf16.msra.mxu0 0
        %1165 = vmatpush.bf16.msra.mxu0 0
        %1166 = vmatpush.bf16.msra.mxu0 0
        %1167 = vmatpush.bf16.msra.mxu0 %v1139
        %1168 = vmatmul.bf16.gmra.mxu0 %v1133
        %v1169 = vpop.f32.mrf.mxu0
        %v1170 = vadd.f32 %v1129, %v1169
        %v1171 = vpop.f32.mrf.mxu0
        %1172 = vdwg.mxu0
        %1173 = vmatpush.bf16.msra.mxu0 0
        %1174 = vmatpush.bf16.msra.mxu0 0
        %1175 = vmatpush.bf16.msra.mxu0 0
        %1176 = vmatpush.bf16.msra.mxu0 0
        %1177 = vmatpush.bf16.msra.mxu0 0
        %1178 = vmatpush.bf16.msra.mxu0 0
        %1179 = vmatpush.bf16.msra.mxu0 0
        %1180 = vmatpush.bf16.msra.mxu0 %v1142
        %1181 = vmatmul.bf16.gmra.mxu0 %v1133
        %v1182 = vpop.f32.mrf.mxu0
        %v1183 = vadd.f32 %v1129, %v1182
        %v1184 = vpop.f32.mrf.mxu0
        %1185 = vdwg.mxu0
        %1186 = vmatpush.bf16.msra.mxu0 0
        %1187 = vmatpush.bf16.msra.mxu0 0
        %1188 = vmatpush.bf16.msra.mxu0 0
        %1189 = vmatpush.bf16.msra.mxu0 0
        %1190 = vmatpush.bf16.msra.mxu0 0
        %1191 = vmatpush.bf16.msra.mxu0 0
        %1192 = vmatpush.bf16.msra.mxu0 0
        %1193 = vmatpush.bf16.msra.mxu0 %v1145
        %1194 = vmatmul.bf16.gmra.mxu0 %v1133
        %v1195 = vpop.f32.mrf.mxu0
        %v1196 = vadd.f32 %v1129, %v1195
        %v1197 = vpop.f32.mrf.mxu0
        %1198 = vdwg.mxu0
        %v1203 = vrot.slane %v1157, 6
        %v1204 = vrot.slane %v1170, 6
        %v1205 = vrot.slane %v1183, 6
        %v1206 = vrot.slane %v1196, 6
        %v1211 = vadd.f32 %v586, %v1203
        %v1212 = vadd.f32 %v587, %v1204
        %v1213 = vadd.f32 %v588, %v1205
        %v1214 = vadd.f32 %v589, %v1206
        %1219 = vst [vmem:[#allocation1] sm:$0xff] %v1211
        %1220 = vst [vmem:[#allocation1 + $0x9] sm:$0xff] %v1212
        %1221 = vst [vmem:[#allocation1 + $0x12] sm:$0xff] %v1213
        %1222 = vst [vmem:[#allocation1 + $0x1b] sm:$0xff] %v1214
        %s1223 = scalar_lea.vmem [#allocation1], 2
        %v1224 = vld [vmem:[%s1223] ss:$9 sm:$0xff]
        %v1226 = vlaneseq
        %vm1227 = vcmp.ge.s32.totalorder %v1226, 0
        %vm1228 = vcmp.lt.s32.totalorder %v1226, 512
        %vm1229 = vmand %vm1227, %vm1228
        %1230 = vst.msk [vmem:[%s277] sm:$0xf] %vm1229, %v1224
        %s1231 = sand.u32 %s169, 1
        %s1232 = scalar_lea.sflag [#allocation3], %s1231
        %s1233 = sand.u32 %s169, 1
        %s1234 = smul.addr %s1233, 4
        %s1235 = scalar_lea.vmem [#allocation2], %s1234
        // Predicated region
        $region45: #{zrm_forward_pallas.1} parent=43 // pred_check
          %p1236 = pneg %p179
        $region46: #{zrm_forward_pallas.1} parent=43 // pred_check_branch
          %1238 = sbr.rel (%p1236) target = $region48
        $region47: #{zrm_forward_pallas.1} parent=43 // pred_region
          %s1239 = smul.u32 4, %s20
          %1241 = vsyncadd %s1232, 0
          %s1242 = scalar_lea.hbm %s6, %s1239
          %s1244 = sshll.u32 %s1235, 4
          %s1245 = int_to_ptr.vmem [resolvable:$true] %s1244
          %s1246 = sshll.u32 %s1242, 4
          %s1247 = int_to_ptr.hbm [resolvable:$true] %s1246
          %1249 = dma.vmem_to_hbm [thread:$0]  %s1245, 64, %s1247, %s1232
        $region48: #{zrm_forward_pallas.1} parent=43 // pred_fallthru
          _
      $region44: #{zrm_forward_pallas.1} parent=5 // pred_fallthru
        _
      %p1250 = scmp.le.s32.totalorder 2, %s15
      // Predicated region
      $region49: #{zrm_forward_pallas.1} parent=5 // pred_check
        %p1251 = pneg %p1250
      $region50: #{zrm_forward_pallas.1} parent=5 // pred_check_branch
        %1253 = sbr.rel (%p1251) target = $region52
      $region51: #{zrm_forward_pallas.1} parent=5 // pred_region
        %s1254 = ssub.s32 %s15, 2
        // Predicated region
        $region53: #{zrm_forward_pallas.1} parent=51 // pred_check
          %p1255 = pneg %p185
        $region54: #{zrm_forward_pallas.1} parent=51 // pred_check_branch
          %1257 = sbr.rel (%p1255) target = $region56
        $region55: #{zrm_forward_pallas.1} parent=51 // pred_region
          %s1258 = sand.u32 %s170, 1
          %s1259 = scalar_lea.sflag [#allocation3], %s1258
          %s1260 = sand.u32 %s170, 1
          %s1261 = smul.addr %s1260, 4
          %s1262 = scalar_lea.vmem [#allocation2], %s1261
          %1264 = dma.done %s1259, 64
        $region56: #{zrm_forward_pallas.1} parent=51 // pred_fallthru
          _
      $region52: #{zrm_forward_pallas.1} parent=5 // pred_fallthru
        _
    $region6: #{zrm_forward_pallas.1} parent=1 // loop_footer
      %s19 = sadd.s32 1, %s15
    $region7: #{zrm_forward_pallas.1} parent=1 // loop_footer_branch
      %14 = sbr.rel target = $region3
    $region8: #{zrm_forward_pallas.1} parent=1 // loop_exit
      _
    %1265 = vsyncpa [#allocation3], 1
    %s1266 = scalar_lea.sflag [#allocation3], 1
    %1267 = vsyncpa %s1266, 1

</llo_original>
